<compile_context>
chip_gen: v7x
topology: tpu7x:2x2x1
jax: 0.10.0
libtpu: 0.0.40
codegen_flags: <defaults>
</compile_context>

<pallas_src>
import math

import jax
import jax.numpy as jnp
from jax.experimental import pallas as pl
from jax.experimental.pallas import tpu as pltpu


# ~4 MiB per input tile -> ~16 MiB double-buffered in+out, safe on v5e/v6e/v7x.
_TARGET_TILE_BYTES = 4 * 1024 * 1024
# Cap on bytes per tile row (2048 lanes f32 / 4096 lanes bf16).
_LANE_BYTES_CAP = 8192
# Below this many activation bytes, use plain XLA instead of pallas_call.
_MIN_PALLAS_BYTES = 1 << 20


def _jumprelu_kernel(x_ref, logthr_ref, o_ref):
    x = x_ref[...]                                  # [TB, TF], input dtype
    thr = jnp.exp(logthr_ref[...])                  # [1, TF] f32 (EUP, idle slot)
    # Compare in f32 (x promoted) -> matches PyTorch promotion for bf16/fp16.
    keep = x.astype(jnp.float32) > thr
    o_ref[...] = jnp.where(keep, x, jnp.zeros_like(x))


def _jumprelu_2d(x: jax.Array, log_threshold_f32: jax.Array) -> jax.Array:
    """x: [B, F]; log_threshold_f32: [F] (float32)."""
    B, F = x.shape
    itemsize = x.dtype.itemsize
    logthr_2d = log_threshold_f32.reshape(1, F)

    # Lane tile width: multiple of 128 (capped by row-byte budget) or full F.
    if F % 128 == 0:
        tf_cap = max(128, (_LANE_BYTES_CAP // itemsize) // 128 * 128)
        TF = min(F, tf_cap)
    else:
        TF = F  # non-lane-dense fallback: must take the whole feature dim

    # Row tile: aim for ~_TARGET_TILE_BYTES per tile, multiple of 8 (or full B).
    rows = max(1, _TARGET_TILE_BYTES // max(1, TF * itemsize))
    if rows >= B:
        TB = B
    else:
        TB = max(8, (rows // 8) * 8)
        TB = min(TB, B)

    # Keep both v7x TensorCores busy: if the grid would be a single block,
    # split B into >=2 row-blocks (still a multiple of 8).
    if B >= 16 and pl.cdiv(B, TB) == 1 and pl.cdiv(F, TF) == 1:
        half = (((B + 1) // 2) + 7) // 8 * 8
        if half < B:
            TB = half

    grid = (pl.cdiv(B, TB), pl.cdiv(F, TF))

    return pl.pallas_call(
        _jumprelu_kernel,
        out_shape=jax.ShapeDtypeStruct((B, F), x.dtype),
        grid=grid,
        in_specs=[
            pl.BlockSpec((TB, TF), lambda i, j: (i, j)),
            pl.BlockSpec((1, TF), lambda i, j: (0, j)),
        ],
        out_specs=pl.BlockSpec((TB, TF), lambda i, j: (i, j)),
        compiler_params=pltpu.CompilerParams(
            dimension_semantics=("parallel", "parallel"),
            vmem_limit_bytes=32 * 1024 * 1024,
        ),
    )(x, logthr_2d)


def _pack_lane_width(B: int, F: int):
    """Lane-dense pack width L (multiple of both F and 128), scaled toward 2048
    lanes, such that B*F elements pack evenly into rows of L. None if impossible."""
    L0 = F * 128 // math.gcd(F, 128)  # lcm(F, 128)
    total = B * F
    if total % L0 != 0:
        return None
    L = L0
    k = 2048 // L0
    while k > 1:
        if total % (L0 * k) == 0:
            L = L0 * k
            break
        k -= 1
    return L


def jumprelu(x: jax.Array, log_threshold: jax.Array, bandwidth: float = 0.001,
             *, force_pallas: bool = False) -> jax.Array:
    """JumpReLU forward. `bandwidth` is unused in forward (backward-only)."""
    del bandwidth  # forward-pass no-op
    orig_shape = x.shape
    F = orig_shape[-1]
    assert log_threshold.shape == (F,)
    logthr = log_threshold.astype(jnp.float32)

    # Small-input fallback: pallas_call launch + pipeline prologue dominates
    # tiny shapes; a fused XLA elementwise is strictly faster there.
    nbytes = x.size * x.dtype.itemsize
    if not force_pallas and nbytes < _MIN_PALLAS_BYTES:
        thr = jnp.exp(logthr)
        return jnp.where(x.astype(jnp.float32) > thr, x, jnp.zeros_like(x))

    x2d = x.reshape(-1, F)
    B = x2d.shape[0]
    total = B * F

    # Lane-dense repack for any F that is not a multiple of 128: present a
    # last dim that is a multiple of 128 so stores are unmasked full-lane vst.
    if F % 128 != 0:
        L = _pack_lane_width(B, F)
        if L is not None:
            reps = L // F
            x_pack = x2d.reshape(total // L, L)
            thr_pack = jnp.tile(logthr, reps)  # (L,), thr_pack[j] = logthr[j % F]
            out = _jumprelu_2d(x_pack, thr_pack)
            return out.reshape(orig_shape)

    out = _jumprelu_2d(x2d, logthr)
    return out.reshape(orig_shape)


def _reference(x, log_threshold):
    thr = jnp.exp(log_threshold.astype(jnp.float32))[None, :]
    x2d = x.reshape(-1, x.shape[-1])
    mask = (x2d.astype(jnp.float32) > thr).astype(x.dtype)
    return (x2d * mask).reshape(x.shape)


if __name__ == "__main__":
    key = jax.random.PRNGKey(0)
    bandwidth = 0.001
    k1, k2, k3, k4 = jax.random.split(key, 4)

    # Small demo shape matching the module (feature_size=32), forced through
    # the Pallas path (normally routed to the XLA small-input fallback).
    batch, feature_size = 8, 32
    x = jax.random.normal(k1, (batch, feature_size), dtype=jnp.float32)
    log_threshold = jnp.zeros((feature_size,), dtype=jnp.float32)  # nn.Parameter(zeros)
    out = jumprelu(x, log_threshold, bandwidth, force_pallas=True)
    jax.block_until_ready(out)
    assert out.shape == (batch, feature_size)
    assert jnp.allclose(out, _reference(x, log_threshold), atol=1e-6), "mismatch (small)"

    # Multi-tile f32 shape with a partial boundary row-block (natural Pallas path).
    x_big = jax.random.normal(k2, (3000, 512), dtype=jnp.float32)
    lt_big = 0.1 * jax.random.normal(jax.random.PRNGKey(1), (512,), dtype=jnp.float32)
    out_big = jumprelu(x_big, lt_big, bandwidth)
    jax.block_until_ready(out_big)
    assert jnp.allclose(out_big, _reference(x_big, lt_big), atol=1e-6), "mismatch (big)"

    # Non-multiple-of-128 feature size -> generalized lane-dense repack path.
    x_96 = jax.random.normal(k3, (4096, 96), dtype=jnp.float32)
    lt_96 = 0.05 * jax.random.normal(jax.random.PRNGKey(2), (96,), dtype=jnp.float32)
    out_96 = jumprelu(x_96, lt_96, bandwidth)
    jax.block_until_ready(out_96)
    assert jnp.allclose(out_96, _reference(x_96, lt_96), atol=1e-6), "mismatch (F=96)"

    # bf16 activations: f32 compare, bf16 passthrough output.
    x_bf = jax.random.normal(k4, (2048, 512), dtype=jnp.bfloat16)
    lt_bf = 0.1 * jax.random.normal(jax.random.PRNGKey(3), (512,), dtype=jnp.float32)
    out_bf = jumprelu(x_bf, lt_bf, bandwidth)
    jax.block_until_ready(out_bf)
    assert out_bf.dtype == jnp.bfloat16
    assert jnp.allclose(out_bf.astype(jnp.float32),
                        _reference(x_bf, lt_bf).astype(jnp.float32)), "mismatch (bf16)"

    print("KERNEL_OK")
</pallas_src>

<mosaic_0001>
module attributes {stable_mosaic.version = 11 : i64} {
  func.func @_jumprelu_kernel(%arg0: i32, %arg1: i32, %arg2: memref<1x256xf32, #tpu.memory_space<vmem>>, %arg3: memref<1x256xf32, #tpu.memory_space<vmem>>, %arg4: memref<1x256xf32, #tpu.memory_space<vmem>>) attributes {dimension_semantics = [#tpu.dimension_semantics<parallel>, #tpu.dimension_semantics<parallel>], iteration_bounds = array<i64: 1, 1>, scalar_prefetch = 0 : i64, scratch_operands = 0 : i64, tpu.core_type = #tpu.core_type<tc>, window_params = [{transform_indices = @transform_0, window_bounds = array<i64: 1, 256>}, {transform_indices = @transform_1, window_bounds = array<i64: 1, 256>}, {transform_indices = @transform_2, window_bounds = array<i64: 1, 256>}]} {
    %c0 = arith.constant 0 : index
    %c0_0 = arith.constant 0 : index
    %0 = vector.load %arg2[%c0, %c0_0] : memref<1x256xf32, #tpu.memory_space<vmem>>, vector<1x256xf32>
    %c0_1 = arith.constant 0 : index
    %c0_2 = arith.constant 0 : index
    %1 = vector.load %arg3[%c0_1, %c0_2] : memref<1x256xf32, #tpu.memory_space<vmem>>, vector<1x256xf32>
    %2 = math.exp %1 : vector<1x256xf32>
    %3 = arith.cmpf ogt, %0, %2 : vector<1x256xf32>
    %cst = arith.constant 0.000000e+00 : f32
    %4 = vector.broadcast %cst : f32 to vector<1x256xf32>
    %5 = arith.select %3, %0, %4 : vector<1x256xi1>, vector<1x256xf32>
    %c0_3 = arith.constant 0 : index
    %c0_4 = arith.constant 0 : index
    %6 = vector.load %arg4[%c0_3, %c0_4] : memref<1x256xf32, #tpu.memory_space<vmem>>, vector<1x256xf32>
    tpu.vector_store %arg4[%c0_3, %c0_4], %5 {strides = array<i32>} : memref<1x256xf32, #tpu.memory_space<vmem>>, vector<1x256xf32>,
    return
  }
  func.func @transform_0(%arg0: i32, %arg1: i32) -> (i32, i32) {
    %c0_i32 = arith.constant 0 : i32
    return %arg0, %arg1 : i32, i32
  }
  func.func @transform_1(%arg0: i32, %arg1: i32) -> (i32, i32) {
    %c0_i32 = arith.constant 0 : i32
    %c0_i32_0 = arith.constant 0 : i32
    return %c0_i32, %arg1 : i32, i32
  }
  func.func @transform_2(%arg0: i32, %arg1: i32) -> (i32, i32) {
    %c0_i32 = arith.constant 0 : i32
    return %arg0, %arg1 : i32, i32
  }
}

</mosaic_0001>

<llo_original>
// kernel: tpu_custom_call.1
$region0: #{tpu_custom_call.1}
  #allocation0 [shape = 'u32[]', space=smem, size = 0x4, offset = 0x4, fixed_abs, tag = 'smem constant byte address 0x4 - core index']
  #allocation1 [shape = 'u32[144,128]{1,0:T(1,128)}', space=vmem, size = 0x12000, scoped, tag = 'internal scratch']
  %s0 = inlined_call_operand.hbm [shape: f32[1,256], index: 0, kind: input, shape index: {}]
  %s1 = inlined_call_operand.vmem [shape: f32[1,256], index: 1, kind: input, shape index: {}]
  %s2 = inlined_call_operand.hbm [shape: f32[1,256], index: 2, kind: output, shape index: {}]
  %s3 = sld [smem:[#allocation0]]
  $region22: #{tpu_custom_call.1} parent=0
    _
  %s5 = ssub.s32 1, %s3
  %s6 = scalar_select 0, %s5, %s3
  $region1: #{tpu_custom_call.1} parent=0
    #allocation2 [shape = 'u8[1024]{0}', space=vmem, size = 0x400, scoped, tag = 'input window, operand 0, single buffered']
    #allocation3 [shape = 's32[1]{0}', space=sflag, size = 0x4, scoped, tag = 'scoped memory for tpu_custom_call.1']
    #allocation4 [shape = 's32[1]{0}', space=sflag, size = 0x4, scoped, tag = 'scoped memory for tpu_custom_call.1']
    #allocation5 [shape = 'u8[1024]{0}', space=vmem, size = 0x400, scoped, tag = 'output window, operand 0, single buffered']
    %7 = vsyncpa [#allocation3], 0
    %8 = vsyncpa [#allocation4], 0
    // Predicated region
    $region2: #{tpu_custom_call.1} parent=1 // pred_check
      _
    $region3: #{tpu_custom_call.1} parent=1 // pred_check_branch
      %10 = sbr.rel (0) target = $region5
    $region4: #{tpu_custom_call.1} parent=1 // pred_region
      %s12 = ssub.s32 32, 32
      %13 = vsyncadd [#allocation3], %s12
      %s15 = sshll.u32 [#allocation2], 4
      %s16 = int_to_ptr.vmem [resolvable:$true] %s15
      %18 = dma.hbm_to_vmem [thread:$0]  %s0, 32, %s16, [#allocation3]
    $region5: #{tpu_custom_call.1} parent=1 // pred_fallthru
      _
    // Predicated region
    $region6: #{tpu_custom_call.1} parent=1 // pred_check
      _
    $region7: #{tpu_custom_call.1} parent=1 // pred_check_branch
      %20 = sbr.rel (0) target = $region9
    $region8: #{tpu_custom_call.1} parent=1 // pred_region
      _
    $region9: #{tpu_custom_call.1} parent=1 // pred_fallthru
      _
    // Predicated region
    $region10: #{tpu_custom_call.1} parent=1 // pred_check
      _
    $region11: #{tpu_custom_call.1} parent=1 // pred_check_branch
      %22 = sbr.rel (0) target = $region13
    $region12: #{tpu_custom_call.1} parent=1 // pred_region
      %23 = dma.done [#allocation3], 32
    $region13: #{tpu_custom_call.1} parent=1 // pred_fallthru
      _
    %v24 = vld [vmem:[#allocation2] sm:$0x3]
    %v25 = vld [vmem:[%s1] sm:$0x3]
    %v26 = vmul.f32 %v25, 1.442695
    %v27 = vpow.pop %v26
    %vm28 = vcmp.gt.f32.partialorder %v24, %v27
    %v29 = vsel %vm28, %v24, 0.0
    %v30 = vlaneseq
    %vm31 = vcmp.ge.s32.totalorder %v30, 0
    %vm32 = vcmp.lt.s32.totalorder %v30, 256
    %vm33 = vmand %vm31, %vm32
    %34 = vst.msk [vmem:[#allocation5] sm:$0x3] %vm33, %v29
    // Predicated region
    $region14: #{tpu_custom_call.1} parent=1 // pred_check
      _
    $region15: #{tpu_custom_call.1} parent=1 // pred_check_branch
      %36 = sbr.rel (0) target = $region17
    $region16: #{tpu_custom_call.1} parent=1 // pred_region
      %s38 = ssub.s32 32, 32
      %39 = vsyncadd [#allocation4], %s38
      %s41 = sshll.u32 [#allocation5], 4
      %s42 = int_to_ptr.vmem [resolvable:$true] %s41
      %44 = dma.vmem_to_hbm [thread:$0]  %s42, 32, %s2, [#allocation4]
    $region17: #{tpu_custom_call.1} parent=1 // pred_fallthru
      _
    // Predicated region
    $region18: #{tpu_custom_call.1} parent=1 // pred_check
      _
    $region19: #{tpu_custom_call.1} parent=1 // pred_check_branch
      %46 = sbr.rel (0) target = $region21
    $region20: #{tpu_custom_call.1} parent=1 // pred_region
      %47 = dma.done [#allocation4], 32
    $region21: #{tpu_custom_call.1} parent=1 // pred_fallthru
      _
    %48 = vsyncpa [#allocation3], 1
    %49 = vsyncpa [#allocation4], 1

</llo_original>
